<compile_context>
chip_gen: v5e
topology: v5e:2x2
jax: 0.10.0
libtpu: 0.0.40
codegen_flags: <defaults>
</compile_context>

<pallas_src>
import jax
import jax.numpy as jnp
from jax.experimental import pallas as pl
from jax.experimental.pallas import tpu as pltpu

NUM_CLASSES = 4
EOS_COEF = 0.1
NUM_POINTS = 16
OVERSAMPLE_RATIO = 3
IMPORTANCE_SAMPLE_RATIO = 0.75
FOCAL_ALPHA = 0.25
FOCAL_GAMMA = 2.0   # exactly 2 -> jnp.square in-kernel, never float pow


def _round_up(x, m):
    return ((x + m - 1) // m) * m


# ----------------------------------------------------------------------------
# Fused Pallas kernel: all loss reductions in one launch, tiled over N.
# ----------------------------------------------------------------------------
def _fused_losses_kernel(nm_ref, nvalid_ref, cls_ref, tgt_ref,
                         ptx_ref, ptt_ref, dot_ref, tok_ref, out_ref):
    """out_ref (SMEM f32[4]) = [loss_ce, loss_mask, loss_dice, loss_grounding]."""
    n = pl.program_id(0)
    inv_nm = 1.0 / nm_ref[0]            # one scalar divide, reused by 3 losses

    # ---- one-shot paths + accumulator init (first grid step only) ----------
    @pl.when(n == 0)
    def _():
        # weighted cross-entropy (F.cross_entropy w/ empty_weight, 'mean');
        # lane-dense layout [C+1, BQ] -> reduce over sublane axis 0.
        x = cls_ref[...].astype(jnp.float32)                        # [C+1, BQ]
        t = tgt_ref[...]                                            # [1,  BQ] int32
        m = jnp.max(x, axis=0, keepdims=True)
        lse = jnp.log(jnp.sum(jnp.exp(x - m), axis=0, keepdims=True)) + m
        cls_iota = jax.lax.broadcasted_iota(jnp.int32, x.shape, 0)
        onehot = (cls_iota == t).astype(jnp.float32)
        nll = jnp.sum(onehot * (lse - x), axis=0, keepdims=True)    # [1, BQ]
        # empty_weight == ones(C+1) with [-1] = EOS_COEF -> gather via compare.
        wt = jnp.where(t == NUM_CLASSES, jnp.float32(EOS_COEF), jnp.float32(1.0))
        out_ref[0] = jnp.sum(wt * nll) / jnp.sum(wt)
        out_ref[1] = 0.0
        out_ref[2] = 0.0

        # token sigmoid focal loss (alpha=0.25, gamma=2); lane-dense [T, BQ].
        xd = dot_ref[...].astype(jnp.float32)
        td = tok_ref[...].astype(jnp.float32)
        ed = jnp.exp(-jnp.abs(xd))
        bce_d = jnp.maximum(xd, 0.0) - xd * td + jnp.log(1.0 + ed)  # stable BCE
        pd = jnp.where(xd >= 0.0, 1.0, ed) / (1.0 + ed)             # exact sigmoid
        p_t = pd * td + (1.0 - pd) * (1.0 - td)
        alpha_t = FOCAL_ALPHA * td + (1.0 - FOCAL_ALPHA) * (1.0 - td)
        out_ref[3] = jnp.sum(alpha_t * bce_d * jnp.square(1.0 - p_t)) * inv_nm

    # ---- per-tile sigmoid-CE + dice partials on sampled points -------------
    xl = ptx_ref[...].astype(jnp.float32)                           # [TILE_N, P]
    tl = ptt_ref[...].astype(jnp.float32)
    tile_n = xl.shape[0]
    row = jax.lax.broadcasted_iota(jnp.int32, (tile_n, 1), 0) + n * tile_n
    valid = (row < nvalid_ref[0]).astype(jnp.float32)               # mask padded rows

    e = jnp.exp(-jnp.abs(xl))                                       # shared exp
    bce = jnp.maximum(xl, 0.0) - xl * tl + jnp.log(1.0 + e)         # stable BCE
    p = jnp.where(xl >= 0.0, 1.0, e) / (1.0 + e)                    # exact sigmoid

    bce_row = jnp.sum(bce, axis=-1, keepdims=True)                  # [TILE_N, 1]
    out_ref[1] += jnp.sum(valid * bce_row)

    numer = 2.0 * jnp.sum(p * tl, axis=-1, keepdims=True)
    denom = jnp.sum(p + tl, axis=-1, keepdims=True)                 # fused reduction
    dice = 1.0 - (numer + 1.0) / (denom + 1.0)
    out_ref[2] += jnp.sum(valid * dice)

    # ---- finalize (last grid step) ------------------------------------------
    @pl.when(n == pl.num_programs(0) - 1)
    def _():
        out_ref[1] = out_ref[1] * (inv_nm * (1.0 / xl.shape[1]))    # mean(1).sum()/nm
        out_ref[2] = out_ref[2] * inv_nm


def fused_losses(class_logits, target_classes, point_logits, point_labels,
                 dot_logits, token_labels, num_masks):
    """Single pallas_call for all loss scalars. Inputs keep their dtype."""
    B, Q, C1 = class_logits.shape
    T = dot_logits.shape[-1]
    BQ = B * Q
    N, P = point_logits.shape

    # Lane-dense transposes: the long BQ axis becomes the last (128-lane) dim.
    cls_t = class_logits.reshape(BQ, C1).T            # [C+1, BQ]
    tgt_t = target_classes.reshape(1, BQ).astype(jnp.int32)
    dot_t = dot_logits.reshape(BQ, T).T               # [T, BQ]
    tok_t = token_labels.reshape(BQ, T).T              # [T, BQ]

    # Tile N so that 2 inputs x 2 pipeline buffers of the point block stay
    # under ~24 MiB (v7x has only 64 MiB VMEM; v5e/v6e default scoped limits
    # are 16/32 MiB).  Cap at 256 rows; keep the full P per block so dice's
    # per-row reductions stay single pass.
    itemsize = point_logits.dtype.itemsize
    budget = 24 * 1024 * 1024
    max_rows = max(8, (budget // (4 * max(P, 1) * itemsize)) // 8 * 8)
    tile_n = int(min(256, max_rows, _round_up(max(N, 1), 8)))
    n_pad = _round_up(max(N, 1), tile_n)
    pad = n_pad - N
    if pad:
        point_logits = jnp.pad(point_logits, ((0, pad), (0, 0)))
        point_labels = jnp.pad(point_labels, ((0, pad), (0, 0)))

    point_block_bytes = tile_n * P * itemsize
    small_bytes = (cls_t.size * cls_t.dtype.itemsize + tgt_t.size * 4
                   + dot_t.size * dot_t.dtype.itemsize
                   + tok_t.size * tok_t.dtype.itemsize)
    vmem_limit = int(min(max(4 * point_block_bytes + 2 * small_bytes + (2 << 20),
                             16 << 20), 64 << 20))

    out = pl.pallas_call(
        _fused_losses_kernel,
        out_shape=jax.ShapeDtypeStruct((4,), jnp.float32),
        grid=(n_pad // tile_n,),
        in_specs=[
            pl.BlockSpec(memory_space=pltpu.MemorySpace.SMEM),     # num_masks (f32[1])
            pl.BlockSpec(memory_space=pltpu.MemorySpace.SMEM),     # n_valid   (i32[1])
            pl.BlockSpec((C1, BQ), lambda n: (0, 0)),              # class logits
            pl.BlockSpec((1, BQ), lambda n: (0, 0)),               # target classes
            pl.BlockSpec((tile_n, P), lambda n: (n, 0)),           # point logits
            pl.BlockSpec((tile_n, P), lambda n: (n, 0)),           # point labels
            pl.BlockSpec((T, BQ), lambda n: (0, 0)),               # dot-product logits
            pl.BlockSpec((T, BQ), lambda n: (0, 0)),               # token labels
        ],
        out_specs=pl.BlockSpec(memory_space=pltpu.MemorySpace.SMEM),
        compiler_params=pltpu.CompilerParams(
            dimension_semantics=("arbitrary",),
            vmem_limit_bytes=vmem_limit),
    )(jnp.asarray([num_masks], jnp.float32),
      jnp.asarray([N], jnp.int32),
      cls_t, tgt_t, point_logits, point_labels, dot_t, tok_t)
    return out[0], out[1], out[2], out[3]


# ----------------------------------------------------------------------------
# Plain-JAX glue: point_sample (grid_sample bilinear, align_corners=False)
# and uncertainty-based point selection.
# ----------------------------------------------------------------------------
def point_sample(inp, coords):
    """inp: [N, C, H, W]; coords: [N, P, 2] in [0,1] as (x, y). Returns [N, C, P]."""
    N, C, H, W = inp.shape
    gx = coords[..., 0] * 2.0 - 1.0
    gy = coords[..., 1] * 2.0 - 1.0
    ix = ((gx + 1.0) * W - 1.0) / 2.0
    iy = ((gy + 1.0) * H - 1.0) / 2.0
    x0 = jnp.floor(ix)
    y0 = jnp.floor(iy)
    x1, y1 = x0 + 1.0, y0 + 1.0
    wx1, wy1 = ix - x0, iy - y0
    wx0, wy0 = 1.0 - wx1, 1.0 - wy1

    flat = inp.reshape(N, C, H * W)

    def gather(xi, yi):
        valid = (xi >= 0) & (xi <= W - 1) & (yi >= 0) & (yi <= H - 1)
        xc = jnp.clip(xi, 0, W - 1).astype(jnp.int32)
        yc = jnp.clip(yi, 0, H - 1).astype(jnp.int32)
        idx = (yc * W + xc)[:, None, :]                              # [N,1,P]
        vals = jnp.take_along_axis(
            flat, jnp.broadcast_to(idx, (N, C, idx.shape[-1])), axis=2)
        return vals * valid[:, None, :].astype(inp.dtype)

    out = (gather(x0, y0) * (wx0 * wy0)[:, None, :]
           + gather(x1, y0) * (wx1 * wy0)[:, None, :]
           + gather(x0, y1) * (wx0 * wy1)[:, None, :]
           + gather(x1, y1) * (wx1 * wy1)[:, None, :])
    return out


def get_uncertain_point_coords_with_randomness(key, coarse_logits, num_points,
                                               oversample_ratio, importance_sample_ratio):
    # TODO(synk): uses JAX PRNG instead of torch.rand; sampling distribution matches, draws differ.
    N = coarse_logits.shape[0]
    num_sampled = int(num_points * oversample_ratio)
    k1, k2 = jax.random.split(key)
    coords = jax.random.uniform(k1, (N, num_sampled, 2), jnp.float32)
    sampled = point_sample(coarse_logits, coords)            # [N, 1, num_sampled]
    uncertainty = -jnp.abs(sampled)[:, 0, :]                  # calculate_uncertainty
    num_unc = int(importance_sample_ratio * num_points)
    num_rand = num_points - num_unc
    _, idx = jax.lax.top_k(uncertainty, num_unc)
    sel = jnp.take_along_axis(coords, idx[:, :, None], axis=1)
    if num_rand > 0:
        sel = jnp.concatenate([sel, jax.random.uniform(k2, (N, num_rand, 2), jnp.float32)], axis=1)
    return sel


# ----------------------------------------------------------------------------
# Criterion forward
# ----------------------------------------------------------------------------
def set_criterion_forward(key, outputs, targets, support_label):
    B, Q, _ = outputs["pred_logits"].shape

    # TODO(synk): Hungarian matcher is an external injected module; use a deterministic
    # identity matching (query i <-> target i) in its place.
    nts = [int(t["labels"].shape[0]) for t in targets]
    indices = [(jnp.arange(n), jnp.arange(n)) for n in nts]
    # TODO(synk): no distributed all_reduce of num_masks (single-device assumption).
    num_masks = float(max(sum(nts), 1))

    losses = {}

    # ---- vectorized label construction ----
    if len(set(nts)) == 1 and nts[0] > 0:
        nt = nts[0]
        labels = jnp.stack([t["labels"].astype(jnp.int32) for t in targets])   # [B, nt]
        target_classes = jnp.concatenate(
            [labels, jnp.full((B, Q - nt), NUM_CLASSES, jnp.int32)], axis=1)
        matched_class = jnp.concatenate(
            [labels, jnp.full((B, Q - nt), -1, jnp.int32)], axis=1)
    else:
        # ragged fallback
        target_classes = jnp.full((B, Q), NUM_CLASSES, jnp.int32)
        matched_class = jnp.full((B, Q), -1, jnp.int32)
        for b, (src, tgt) in enumerate(indices):
            lab = targets[b]["labels"][tgt].astype(jnp.int32)
            target_classes = target_classes.at[b, src].set(lab)
            matched_class = matched_class.at[b, src].set(lab)

    # ---- gather matched predicted / target masks (single XLA gathers) -------
    batch_idx = jnp.concatenate([jnp.full_like(s, i) for i, (s, _) in enumerate(indices)])
    src_idx = jnp.concatenate([s for s, _ in indices])
    tgt_batch = jnp.concatenate([jnp.full_like(t, i) for i, (_, t) in enumerate(indices)])
    tgt_i = jnp.concatenate([t for _, t in indices])

    src_masks = outputs["pred_masks"][batch_idx, src_idx][:, None]              # [N,1,H,W]
    target_masks = jnp.stack([t["masks"] for t in targets])[tgt_batch, tgt_i][:, None]

    point_coords = get_uncertain_point_coords_with_randomness(
        key, src_masks, NUM_POINTS, OVERSAMPLE_RATIO, IMPORTANCE_SAMPLE_RATIO)
    point_labels = point_sample(target_masks, point_coords)[:, 0, :]            # [N,P]
    point_logits = point_sample(src_masks, point_coords)[:, 0, :]               # [N,P]

    # ---- grounding token labels (one vectorized op) --------------------------
    token_labels = ((matched_class[:, :, None] == support_label[:, None, :])
                    & (matched_class[:, :, None] >= 0)).astype(jnp.float32)     # [B,Q,T]

    # ---- single fused Pallas launch for all loss scalars ---------------------
    loss_ce, loss_mask, loss_dice, loss_grounding = fused_losses(
        outputs["pred_logits"], target_classes, point_logits, point_labels,
        outputs["pred_dot_product_logits"], token_labels, num_masks)

    losses["loss_ce"] = loss_ce
    losses["loss_mask"] = loss_mask
    losses["loss_dice"] = loss_dice
    losses["loss_grounding"] = loss_grounding
    return losses


# ----------------------------------------------------------------------------
if __name__ == "__main__":
    key = jax.random.PRNGKey(0)
    B, Q, H, W, T, NT = 2, 8, 16, 16, 6, 3
    ks = jax.random.split(key, 8)

    outputs = {
        "pred_logits": jax.random.normal(ks[0], (B, Q, NUM_CLASSES + 1), jnp.float32),
        "pred_masks": jax.random.normal(ks[1], (B, Q, H, W), jnp.float32),
        "pred_dot_product_logits": jax.random.normal(ks[2], (B, Q, T), jnp.float32),
    }
    targets = [
        {
            "labels": jax.random.randint(jax.random.fold_in(ks[3], b), (NT,), 0, NUM_CLASSES),
            "masks": (jax.random.uniform(jax.random.fold_in(ks[4], b), (NT, H, W)) > 0.5
                      ).astype(jnp.float32),
        }
        for b in range(B)
    ]
    support_label = jax.random.randint(ks[5], (B, T), 0, NUM_CLASSES)

    losses = set_criterion_forward(ks[6], outputs, targets, support_label)
    losses = jax.tree_util.tree_map(jax.block_until_ready, losses)

    for k, v in losses.items():
        assert jnp.isfinite(v), f"non-finite loss {k}"
    print("KERNEL_OK")
</pallas_src>

<mosaic_0001>
module attributes {stable_mosaic.version = 11 : i64} {
  func.func @_fused_losses_kernel(%arg0: i32, %arg1: memref<1xf32, #tpu.memory_space<smem>>, %arg2: memref<1xi32, #tpu.memory_space<smem>>, %arg3: memref<5x16xf32, #tpu.memory_space<vmem>>, %arg4: memref<1x16xi32, #tpu.memory_space<vmem>>, %arg5: memref<8x16xf32, #tpu.memory_space<vmem>>, %arg6: memref<8x16xf32, #tpu.memory_space<vmem>>, %arg7: memref<6x16xf32, #tpu.memory_space<vmem>>, %arg8: memref<6x16xf32, #tpu.memory_space<vmem>>, %arg9: memref<4xf32, #tpu.memory_space<smem>>) attributes {dimension_semantics = [#tpu.dimension_semantics<arbitrary>], iteration_bounds = array<i64: 1>, scalar_prefetch = 0 : i64, scratch_operands = 0 : i64, tpu.core_type = #tpu.core_type<tc>, window_params = [{transform_indices = @transform_0, window_bounds = array<i64: 1>}, {transform_indices = @transform_1, window_bounds = array<i64: 1>}, {pipeline_mode = #tpu.pipeline_mode<synchronous>, transform_indices = @transform_2, window_bounds = array<i64: 5, 16>}, {pipeline_mode = #tpu.pipeline_mode<synchronous>, transform_indices = @transform_3, window_bounds = array<i64: 1, 16>}, {transform_indices = @transform_4, window_bounds = array<i64: 8, 16>}, {transform_indices = @transform_5, window_bounds = array<i64: 8, 16>}, {pipeline_mode = #tpu.pipeline_mode<synchronous>, transform_indices = @transform_6, window_bounds = array<i64: 6, 16>}, {pipeline_mode = #tpu.pipeline_mode<synchronous>, transform_indices = @transform_7, window_bounds = array<i64: 6, 16>}, {transform_indices = @transform_8, window_bounds = array<i64: 4>}]} {
    %c0 = arith.constant 0 : index
    %0 = memref.load %arg1[%c0] : memref<1xf32, #tpu.memory_space<smem>>
    %cst = arith.constant 1.000000e+00 : f32
    %1 = arith.divf %cst, %0 : f32
    %c0_i32 = arith.constant 0 : i32
    %2 = arith.cmpi eq, %arg0, %c0_i32 : i32
    %3 = arith.extui %2 : i1 to i32
    %c0_i32_0 = arith.constant 0 : i32
    %4 = arith.cmpi ne, %3, %c0_i32_0 : i32
    scf.if %4 {
      %c0_25 = arith.constant 0 : index
      %c0_26 = arith.constant 0 : index
      %71 = vector.load %arg3[%c0_25, %c0_26] : memref<5x16xf32, #tpu.memory_space<vmem>>, vector<5x16xf32>
      %c0_27 = arith.constant 0 : index
      %c0_28 = arith.constant 0 : index
      %72 = vector.load %arg4[%c0_27, %c0_28] : memref<1x16xi32, #tpu.memory_space<vmem>>, vector<1x16xi32>
      %cst_29 = arith.constant dense<0xFF800000> : vector<16xf32>
      %73 = vector.multi_reduction <maximumf>, %71, %cst_29 [0] : vector<5x16xf32> to vector<16xf32>
      %74 = vector.shape_cast %73 : vector<16xf32> to vector<1x16xf32>
      %75 = vector.broadcast %74 : vector<1x16xf32> to vector<5x16xf32>
      %76 = arith.subf %71, %75 : vector<5x16xf32>
      %77 = math.exp %76 : vector<5x16xf32>
      %cst_30 = arith.constant dense<0.000000e+00> : vector<16xf32>
      %78 = vector.multi_reduction <add>, %77, %cst_30 [0] : vector<5x16xf32> to vector<16xf32>
      %79 = vector.shape_cast %78 : vector<16xf32> to vector<1x16xf32>
      %80 = math.log %79 : vector<1x16xf32>
      %81 = arith.addf %80, %74 : vector<1x16xf32>
      %82 = tpu.iota {dimensions = array<i32: 0>} : vector<5x16xi32>
      %83 = vector.broadcast %72 : vector<1x16xi32> to vector<5x16xi32>
      %84 = arith.cmpi eq, %82, %83 : vector<5x16xi32>
      %85 = arith.extui %84 : vector<5x16xi1> to vector<5x16xi32>
      %86 = arith.sitofp %85 : vector<5x16xi32> to vector<5x16xf32>
      %87 = vector.broadcast %81 : vector<1x16xf32> to vector<5x16xf32>
      %88 = arith.subf %87, %71 : vector<5x16xf32>
      %89 = arith.mulf %86, %88 : vector<5x16xf32>
      %cst_31 = arith.constant dense<0.000000e+00> : vector<16xf32>
      %90 = vector.multi_reduction <add>, %89, %cst_31 [0] : vector<5x16xf32> to vector<16xf32>
      %91 = vector.shape_cast %90 : vector<16xf32> to vector<1x16xf32>
      %c4_i32 = arith.constant 4 : i32
      %92 = vector.broadcast %c4_i32 : i32 to vector<1x16xi32>
      %93 = arith.cmpi eq, %72, %92 : vector<1x16xi32>
      %cst_32 = arith.constant 1.000000e-01 : f32
      %cst_33 = arith.constant 1.000000e+00 : f32
      %94 = vector.broadcast %cst_32 : f32 to vector<1x16xf32>
      %95 = vector.broadcast %cst_33 : f32 to vector<1x16xf32>
      %96 = arith.select %93, %94, %95 : vector<1x16xi1>, vector<1x16xf32>
      %97 = arith.mulf %96, %91 : vector<1x16xf32>
      %98 = vector.shape_cast %97 : vector<1x16xf32> to vector<1x1x16xf32>
      %cst_34 = arith.constant dense<0.000000e+00> : vector<1xf32>
      %99 = vector.multi_reduction <add>, %98, %cst_34 [1, 2] : vector<1x1x16xf32> to vector<1xf32>
      %100 = vector.shape_cast %99 : vector<1xf32> to vector<1x1x1xf32>
      %101 = vector.extract %100[0, 0, 0] : f32 from vector<1x1x1xf32>
      %102 = vector.shape_cast %96 : vector<1x16xf32> to vector<1x1x16xf32>
      %cst_35 = arith.constant dense<0.000000e+00> : vector<1xf32>
      %103 = vector.multi_reduction <add>, %102, %cst_35 [1, 2] : vector<1x1x16xf32> to vector<1xf32>
      %104 = vector.shape_cast %103 : vector<1xf32> to vector<1x1x1xf32>
      %105 = vector.extract %104[0, 0, 0] : f32 from vector<1x1x1xf32>
      %106 = arith.divf %101, %105 : f32
      %c0_36 = arith.constant 0 : index
      %107 = memref.load %arg9[%c0_36] : memref<4xf32, #tpu.memory_space<smem>>
      memref.store %106, %arg9[%c0_36] : memref<4xf32, #tpu.memory_space<smem>>
      %cst_37 = arith.constant 0.000000e+00 : f32
      %c1_38 = arith.constant 1 : index
      %108 = memref.load %arg9[%c1_38] : memref<4xf32, #tpu.memory_space<smem>>
      memref.store %cst_37, %arg9[%c1_38] : memref<4xf32, #tpu.memory_space<smem>>
      %cst_39 = arith.constant 0.000000e+00 : f32
      %c2_40 = arith.constant 2 : index
      %109 = memref.load %arg9[%c2_40] : memref<4xf32, #tpu.memory_space<smem>>
      memref.store %cst_39, %arg9[%c2_40] : memref<4xf32, #tpu.memory_space<smem>>
      %c0_41 = arith.constant 0 : index
      %c0_42 = arith.constant 0 : index
      %110 = vector.load %arg7[%c0_41, %c0_42] : memref<6x16xf32, #tpu.memory_space<vmem>>, vector<6x16xf32>
      %c0_43 = arith.constant 0 : index
      %c0_44 = arith.constant 0 : index
      %111 = vector.load %arg8[%c0_43, %c0_44] : memref<6x16xf32, #tpu.memory_space<vmem>>, vector<6x16xf32>
      %112 = math.absf %110 : vector<6x16xf32>
      %cst_45 = arith.constant 0.000000e+00 : f32
      %113 = vector.broadcast %cst_45 : f32 to vector<6x16xf32>
      %114 = arith.subf %113, %112 : vector<6x16xf32>
      %115 = math.exp %114 : vector<6x16xf32>
      %cst_46 = arith.constant 0.000000e+00 : f32
      %116 = vector.broadcast %cst_46 : f32 to vector<6x16xf32>
      %117 = arith.maximumf %110, %116 : vector<6x16xf32>
      %118 = arith.mulf %110, %111 : vector<6x16xf32>
      %119 = arith.subf %117, %118 : vector<6x16xf32>
      %cst_47 = arith.constant 1.000000e+00 : f32
      %120 = vector.broadcast %cst_47 : f32 to vector<6x16xf32>
      %121 = arith.addf %120, %115 : vector<6x16xf32>
      %122 = math.log %121 : vector<6x16xf32>
      %123 = arith.addf %119, %122 : vector<6x16xf32>
      %cst_48 = arith.constant 0.000000e+00 : f32
      %124 = vector.broadcast %cst_48 : f32 to vector<6x16xf32>
      %125 = arith.cmpf oge, %110, %124 : vector<6x16xf32>
      %cst_49 = arith.constant 1.000000e+00 : f32
      %126 = vector.broadcast %cst_49 : f32 to vector<6x16xf32>
      %127 = arith.select %125, %126, %115 : vector<6x16xi1>, vector<6x16xf32>
      %cst_50 = arith.constant 1.000000e+00 : f32
      %128 = vector.broadcast %cst_50 : f32 to vector<6x16xf32>
      %129 = arith.addf %128, %115 : vector<6x16xf32>
      %130 = arith.divf %127, %129 : vector<6x16xf32>
      %131 = arith.mulf %130, %111 : vector<6x16xf32>
      %cst_51 = arith.constant 1.000000e+00 : f32
      %132 = vector.broadcast %cst_51 : f32 to vector<6x16xf32>
      %133 = arith.subf %132, %130 : vector<6x16xf32>
      %cst_52 = arith.constant 1.000000e+00 : f32
      %134 = vector.broadcast %cst_52 : f32 to vector<6x16xf32>
      %135 = arith.subf %134, %111 : vector<6x16xf32>
      %136 = arith.mulf %133, %135 : vector<6x16xf32>
      %137 = arith.addf %131, %136 : vector<6x16xf32>
      %cst_53 = arith.constant 2.500000e-01 : f32
      %138 = vector.broadcast %cst_53 : f32 to vector<6x16xf32>
      %139 = arith.mulf %138, %111 : vector<6x16xf32>
      %cst_54 = arith.constant 1.000000e+00 : f32
      %140 = vector.broadcast %cst_54 : f32 to vector<6x16xf32>
      %141 = arith.subf %140, %111 : vector<6x16xf32>
      %cst_55 = arith.constant 7.500000e-01 : f32
      %142 = vector.broadcast %cst_55 : f32 to vector<6x16xf32>
      %143 = arith.mulf %142, %141 : vector<6x16xf32>
      %144 = arith.addf %139, %143 : vector<6x16xf32>
      %145 = arith.mulf %144, %123 : vector<6x16xf32>
      %cst_56 = arith.constant 1.000000e+00 : f32
      %146 = vector.broadcast %cst_56 : f32 to vector<6x16xf32>
      %147 = arith.subf %146, %137 : vector<6x16xf32>
      %148 = arith.mulf %147, %147 : vector<6x16xf32>
      %149 = arith.mulf %145, %148 : vector<6x16xf32>
      %150 = vector.shape_cast %149 : vector<6x16xf32> to vector<1x6x16xf32>
      %cst_57 = arith.constant dense<0.000000e+00> : vector<1xf32>
      %151 = vector.multi_reduction <add>, %150, %cst_57 [1, 2] : vector<1x6x16xf32> to vector<1xf32>
      %152 = vector.shape_cast %151 : vector<1xf32> to vector<1x1x1xf32>
      %153 = vector.extract %152[0, 0, 0] : f32 from vector<1x1x1xf32>
      %154 = arith.mulf %153, %1 : f32
      %c3 = arith.constant 3 : index
      %155 = memref.load %arg9[%c3] : memref<4xf32, #tpu.memory_space<smem>>
      memref.store %154, %arg9[%c3] : memref<4xf32, #tpu.memory_space<smem>>
    } else {
    }
    %c0_1 = arith.constant 0 : index
    %c0_2 = arith.constant 0 : index
    %5 = vector.load %arg5[%c0_1, %c0_2] : memref<8x16xf32, #tpu.memory_space<vmem>>, vector<8x16xf32>
    %c0_3 = arith.constant 0 : index
    %c0_4 = arith.constant 0 : index
    %6 = vector.load %arg6[%c0_3, %c0_4] : memref<8x16xf32, #tpu.memory_space<vmem>>, vector<8x16xf32>
    %7 = tpu.iota {dimensions = array<i32: 0>} : vector<8x1xi32>
    %c8_i32 = arith.constant 8 : i32
    %8 = arith.muli %arg0, %c8_i32 : i32
    %9 = vector.broadcast %8 : i32 to vector<8x1xi32>
    %10 = arith.addi %7, %9 : vector<8x1xi32>
    %c0_5 = arith.constant 0 : index
    %11 = memref.load %arg2[%c0_5] : memref<1xi32, #tpu.memory_space<smem>>
    %12 = vector.broadcast %11 : i32 to vector<8x1xi32>
    %13 = arith.cmpi slt, %10, %12 : vector<8x1xi32>
    %14 = arith.extui %13 : vector<8x1xi1> to vector<8x1xi32>
    %15 = arith.sitofp %14 : vector<8x1xi32> to vector<8x1xf32>
    %16 = math.absf %5 : vector<8x16xf32>
    %cst_6 = arith.constant 0.000000e+00 : f32
    %17 = vector.broadcast %cst_6 : f32 to vector<8x16xf32>
    %18 = arith.subf %17, %16 : vector<8x16xf32>
    %19 = math.exp %18 : vector<8x16xf32>
    %cst_7 = arith.constant 0.000000e+00 : f32
    %20 = vector.broadcast %cst_7 : f32 to vector<8x16xf32>
    %21 = arith.maximumf %5, %20 : vector<8x16xf32>
    %22 = arith.mulf %5, %6 : vector<8x16xf32>
    %23 = arith.subf %21, %22 : vector<8x16xf32>
    %cst_8 = arith.constant 1.000000e+00 : f32
    %24 = vector.broadcast %cst_8 : f32 to vector<8x16xf32>
    %25 = arith.addf %24, %19 : vector<8x16xf32>
    %26 = math.log %25 : vector<8x16xf32>
    %27 = arith.addf %23, %26 : vector<8x16xf32>
    %cst_9 = arith.constant 0.000000e+00 : f32
    %28 = vector.broadcast %cst_9 : f32 to vector<8x16xf32>
    %29 = arith.cmpf oge, %5, %28 : vector<8x16xf32>
    %cst_10 = arith.constant 1.000000e+00 : f32
    %30 = vector.broadcast %cst_10 : f32 to vector<8x16xf32>
    %31 = arith.select %29, %30, %19 : vector<8x16xi1>, vector<8x16xf32>
    %cst_11 = arith.constant 1.000000e+00 : f32
    %32 = vector.broadcast %cst_11 : f32 to vector<8x16xf32>
    %33 = arith.addf %32, %19 : vector<8x16xf32>
    %34 = arith.divf %31, %33 : vector<8x16xf32>
    %cst_12 = arith.constant dense<0.000000e+00> : vector<8xf32>
    %35 = vector.multi_reduction <add>, %27, %cst_12 [1] : vector<8x16xf32> to vector<8xf32>
    %36 = vector.shape_cast %35 : vector<8xf32> to vector<8x1xf32>
    %c1 = arith.constant 1 : index
    %37 = memref.load %arg9[%c1] : memref<4xf32, #tpu.memory_space<smem>>
    %38 = arith.mulf %15, %36 : vector<8x1xf32>
    %39 = vector.shape_cast %38 : vector<8x1xf32> to vector<1x8x1xf32>
    %cst_13 = arith.constant dense<0.000000e+00> : vector<1xf32>
    %40 = vector.multi_reduction <add>, %39, %cst_13 [1, 2] : vector<1x8x1xf32> to vector<1xf32>
    %41 = vector.shape_cast %40 : vector<1xf32> to vector<1x1x1xf32>
    %42 = vector.extract %41[0, 0, 0] : f32 from vector<1x1x1xf32>
    %43 = arith.addf %37, %42 : f32
    %c1_14 = arith.constant 1 : index
    %44 = memref.load %arg9[%c1_14] : memref<4xf32, #tpu.memory_space<smem>>
    memref.store %43, %arg9[%c1_14] : memref<4xf32, #tpu.memory_space<smem>>
    %45 = arith.mulf %34, %6 : vector<8x16xf32>
    %cst_15 = arith.constant dense<0.000000e+00> : vector<8xf32>
    %46 = vector.multi_reduction <add>, %45, %cst_15 [1] : vector<8x16xf32> to vector<8xf32>
    %47 = vector.shape_cast %46 : vector<8xf32> to vector<8x1xf32>
    %cst_16 = arith.constant 2.000000e+00 : f32
    %48 = vector.broadcast %cst_16 : f32 to vector<8x1xf32>
    %49 = arith.mulf %48, %47 : vector<8x1xf32>
    %50 = arith.addf %34, %6 : vector<8x16xf32>
    %cst_17 = arith.constant dense<0.000000e+00> : vector<8xf32>
    %51 = vector.multi_reduction <add>, %50, %cst_17 [1] : vector<8x16xf32> to vector<8xf32>
    %52 = vector.shape_cast %51 : vector<8xf32> to vector<8x1xf32>
    %cst_18 = arith.constant 1.000000e+00 : f32
    %53 = vector.broadcast %cst_18 : f32 to vector<8x1xf32>
    %54 = arith.addf %49, %53 : vector<8x1xf32>
    %cst_19 = arith.constant 1.000000e+00 : f32
    %55 = vector.broadcast %cst_19 : f32 to vector<8x1xf32>
    %56 = arith.addf %52, %55 : vector<8x1xf32>
    %57 = arith.divf %54, %56 : vector<8x1xf32>
    %cst_20 = arith.constant 1.000000e+00 : f32
    %58 = vector.broadcast %cst_20 : f32 to vector<8x1xf32>
    %59 = arith.subf %58, %57 : vector<8x1xf32>
    %c2 = arith.constant 2 : index
    %60 = memref.load %arg9[%c2] : memref<4xf32, #tpu.memory_space<smem>>
    %61 = arith.mulf %15, %59 : vector<8x1xf32>
    %62 = vector.shape_cast %61 : vector<8x1xf32> to vector<1x8x1xf32>
    %cst_21 = arith.constant dense<0.000000e+00> : vector<1xf32>
    %63 = vector.multi_reduction <add>, %62, %cst_21 [1, 2] : vector<1x8x1xf32> to vector<1xf32>
    %64 = vector.shape_cast %63 : vector<1xf32> to vector<1x1x1xf32>
    %65 = vector.extract %64[0, 0, 0] : f32 from vector<1x1x1xf32>
    %66 = arith.addf %60, %65 : f32
    %c2_22 = arith.constant 2 : index
    %67 = memref.load %arg9[%c2_22] : memref<4xf32, #tpu.memory_space<smem>>
    memref.store %66, %arg9[%c2_22] : memref<4xf32, #tpu.memory_space<smem>>
    %c0_i32_23 = arith.constant 0 : i32
    %68 = arith.cmpi eq, %arg0, %c0_i32_23 : i32
    %69 = arith.extui %68 : i1 to i32
    %c0_i32_24 = arith.constant 0 : i32
    %70 = arith.cmpi ne, %69, %c0_i32_24 : i32
    scf.if %70 {
      %c1_25 = arith.constant 1 : index
      %71 = memref.load %arg9[%c1_25] : memref<4xf32, #tpu.memory_space<smem>>
      %cst_26 = arith.constant 6.250000e-02 : f32
      %72 = arith.mulf %1, %cst_26 : f32
      %73 = arith.mulf %71, %72 : f32
      %c1_27 = arith.constant 1 : index
      %74 = memref.load %arg9[%c1_27] : memref<4xf32, #tpu.memory_space<smem>>
      memref.store %73, %arg9[%c1_27] : memref<4xf32, #tpu.memory_space<smem>>
      %c2_28 = arith.constant 2 : index
      %75 = memref.load %arg9[%c2_28] : memref<4xf32, #tpu.memory_space<smem>>
      %76 = arith.mulf %75, %1 : f32
      %c2_29 = arith.constant 2 : index
      %77 = memref.load %arg9[%c2_29] : memref<4xf32, #tpu.memory_space<smem>>
      memref.store %76, %arg9[%c2_29] : memref<4xf32, #tpu.memory_space<smem>>
    } else {
    }
    return
  }
  func.func @transform_0(%arg0: i32) -> i32 {
    %c0_i32 = arith.constant 0 : i32
    %c0_i32_0 = arith.constant 0 : i32
    return %c0_i32 : i32
  }
  func.func @transform_1(%arg0: i32) -> i32 {
    %c0_i32 = arith.constant 0 : i32
    %c0_i32_0 = arith.constant 0 : i32
    return %c0_i32 : i32
  }
  func.func @transform_2(%arg0: i32) -> (i32, i32) {
    %c0_i32 = arith.constant 0 : i32
    %c0_i32_0 = arith.constant 0 : i32
    %c0_i32_1 = arith.constant 0 : i32
    return %c0_i32, %c0_i32_0 : i32, i32
  }
  func.func @transform_3(%arg0: i32) -> (i32, i32) {
    %c0_i32 = arith.constant 0 : i32
    %c0_i32_0 = arith.constant 0 : i32
    %c0_i32_1 = arith.constant 0 : i32
    return %c0_i32, %c0_i32_0 : i32, i32
  }
  func.func @transform_4(%arg0: i32) -> (i32, i32) {
    %c0_i32 = arith.constant 0 : i32
    %c0_i32_0 = arith.constant 0 : i32
    return %arg0, %c0_i32 : i32, i32
  }
  func.func @transform_5(%arg0: i32) -> (i32, i32) {
    %c0_i32 = arith.constant 0 : i32
    %c0_i32_0 = arith.constant 0 : i32
    return %arg0, %c0_i32 : i32, i32
  }
  func.func @transform_6(%arg0: i32) -> (i32, i32) {
    %c0_i32 = arith.constant 0 : i32
    %c0_i32_0 = arith.constant 0 : i32
    %c0_i32_1 = arith.constant 0 : i32
    return %c0_i32, %c0_i32_0 : i32, i32
  }
  func.func @transform_7(%arg0: i32) -> (i32, i32) {
    %c0_i32 = arith.constant 0 : i32
    %c0_i32_0 = arith.constant 0 : i32
    %c0_i32_1 = arith.constant 0 : i32
    return %c0_i32, %c0_i32_0 : i32, i32
  }
  func.func @transform_8(%arg0: i32) -> i32 {
    %c0_i32 = arith.constant 0 : i32
    %c0_i32_0 = arith.constant 0 : i32
    return %c0_i32 : i32
  }
}

</mosaic_0001>

<llo_original>
// kernel: tpu_custom_call.1
$region0: #{tpu_custom_call.1}
  #allocation0 [shape = 'u32[]', space=smem, size = 0x4, offset = 0x4, fixed_abs, tag = 'smem constant byte address 0x4 - core index']
  #allocation1 [shape = 'u32[72,128]{1,0:T(1,128)}', space=vmem, size = 0x9000, scoped, tag = 'internal scratch']
  #allocation2 [shape = 'f32[1]{0:T(128)S(6)}', space=smem, size = 0x200, scoped, tag = 'scoped memory for tpu_custom_call.1']
  #allocation3 [shape = 's32[1]{0:T(128)S(6)}', space=smem, size = 0x200, scoped, tag = 'scoped memory for tpu_custom_call.1']
  %s0 = inlined_call_operand.<no memory space> [shape: f32[1], index: 0, kind: input, shape index: {}]
  %s1 = inlined_call_operand.<no memory space> [shape: s32[1], index: 1, kind: input, shape index: {}]
  %s2 = inlined_call_operand.hbm [shape: f32[5,16], index: 2, kind: input, shape index: {}]
  %s3 = inlined_call_operand.hbm [shape: s32[1,16], index: 3, kind: input, shape index: {}]
  %s4 = inlined_call_operand.hbm [shape: f32[8,16], index: 4, kind: input, shape index: {}]
  %s5 = inlined_call_operand.hbm [shape: f32[8,16], index: 5, kind: input, shape index: {}]
  %s6 = inlined_call_operand.hbm [shape: f32[6,16], index: 6, kind: input, shape index: {}]
  %s7 = inlined_call_operand.vmem [shape: f32[6,16], index: 7, kind: input, shape index: {}]
  %s8 = inlined_call_operand.hbm [shape: f32[4], index: 8, kind: output, shape index: {}]
  %s9 = sld [smem:[#allocation0]]
  $region70: #{tpu_custom_call.1} parent=0
    _
  %s11 = ssub.s32 1, %s9
  %s12 = scalar_select 0, %s11, %s9
  %13 = sst [smem:[#allocation2]] %s0
  %14 = sst [smem:[#allocation3]] %s1
  $region1: #{tpu_custom_call.1} parent=0
    #allocation4 [shape = 'u8[4096]{0}', space=vmem, size = 0x1000, scoped, tag = 'input window, operand 2, single buffered']
    #allocation5 [shape = 's32[1]{0}', space=sflag, size = 0x4, scoped, tag = 'scoped memory for tpu_custom_call.1']
    #allocation6 [shape = 's32[1]{0}', space=sflag, size = 0x4, scoped, tag = 'scoped memory for tpu_custom_call.1']
    #allocation7 [shape = 'u8[512]{0}', space=vmem, size = 0x400, scoped, tag = 'input window, operand 3, single buffered']
    #allocation8 [shape = 's32[1]{0}', space=sflag, size = 0x4, scoped, tag = 'scoped memory for tpu_custom_call.1']
    #allocation9 [shape = 'u8[4096]{0}', space=vmem, size = 0x1000, scoped, tag = 'input window, operand 4, single buffered']
    #allocation10 [shape = 'u8[4096]{0}', space=vmem, size = 0x1000, scoped, tag = 'input window, operand 5, single buffered']
    #allocation11 [shape = 's32[1]{0}', space=sflag, size = 0x4, scoped, tag = 'scoped memory for tpu_custom_call.1']
    #allocation12 [shape = 'u8[4096]{0}', space=vmem, size = 0x1000, scoped, tag = 'input window, operand 6, single buffered']
    #allocation13 [shape = 'u8[512]{0}', space=smem, size = 0x200, scoped, tag = 'output window, operand 0, single buffered']
    %15 = vsyncpa [#allocation5], 0
    %16 = vsyncpa [#allocation8], 0
    %17 = vsyncpa [#allocation11], 0
    %18 = vsyncpa [#allocation6], 0
    // Predicated region
    $region2: #{tpu_custom_call.1} parent=1 // pred_check
      _
    $region3: #{tpu_custom_call.1} parent=1 // pred_check_branch
      %20 = sbr.rel (0) target = $region5
    $region4: #{tpu_custom_call.1} parent=1 // pred_region
      _
    $region5: #{tpu_custom_call.1} parent=1 // pred_fallthru
      _
    // Predicated region
    $region6: #{tpu_custom_call.1} parent=1 // pred_check
      _
    $region7: #{tpu_custom_call.1} parent=1 // pred_check_branch
      %22 = sbr.rel (0) target = $region9
    $region8: #{tpu_custom_call.1} parent=1 // pred_region
      _
    $region9: #{tpu_custom_call.1} parent=1 // pred_fallthru
      _
    // Predicated region
    $region10: #{tpu_custom_call.1} parent=1 // pred_check
      _
    $region11: #{tpu_custom_call.1} parent=1 // pred_check_branch
      %24 = sbr.rel (0) target = $region13
    $region12: #{tpu_custom_call.1} parent=1 // pred_region
      %26 = vsyncadd [#allocation5], 0
      %s28 = sshll.u32 %s2, 4
      %s29 = int_to_ptr.hbm [resolvable:$true] %s28
      %s30 = sshll.u32 [#allocation4], 4
      %s31 = int_to_ptr.vmem [resolvable:$true] %s30
      %33 = dma.hbm_to_vmem [thread:$0]  %s29, 128, %s31, [#allocation5]
    $region13: #{tpu_custom_call.1} parent=1 // pred_fallthru
      _
    // Predicated region
    $region14: #{tpu_custom_call.1} parent=1 // pred_check
      _
    $region15: #{tpu_custom_call.1} parent=1 // pred_check_branch
      %35 = sbr.rel (0) target = $region17
    $region16: #{tpu_custom_call.1} parent=1 // pred_region
      %37 = vsyncadd [#allocation8], 0
      %s39 = sshll.u32 %s3, 4
      %s40 = int_to_ptr.hbm [resolvable:$true] %s39
      %s41 = sshll.u32 [#allocation7], 4
      %s42 = int_to_ptr.vmem [resolvable:$true] %s41
      %44 = dma.hbm_to_vmem [thread:$0]  %s40, 16, %s42, [#allocation8]
    $region17: #{tpu_custom_call.1} parent=1 // pred_fallthru
      _
    // Predicated region
    $region18: #{tpu_custom_call.1} parent=1 // pred_check
      _
    $region19: #{tpu_custom_call.1} parent=1 // pred_check_branch
      %46 = sbr.rel (0) target = $region21
    $region20: #{tpu_custom_call.1} parent=1 // pred_region
      %48 = vsyncadd [#allocation8], 0
      %s50 = sshll.u32 %s4, 4
      %s51 = int_to_ptr.hbm [resolvable:$true] %s50
      %s52 = sshll.u32 [#allocation9], 4
      %s53 = int_to_ptr.vmem [resolvable:$true] %s52
      %55 = dma.hbm_to_vmem [thread:$0]  %s51, 128, %s53, [#allocation8]
    $region21: #{tpu_custom_call.1} parent=1 // pred_fallthru
      _
    // Predicated region
    $region22: #{tpu_custom_call.1} parent=1 // pred_check
      _
    $region23: #{tpu_custom_call.1} parent=1 // pred_check_branch
      %57 = sbr.rel (0) target = $region25
    $region24: #{tpu_custom_call.1} parent=1 // pred_region
      %59 = vsyncadd [#allocation11], 0
      %s61 = sshll.u32 %s5, 4
      %s62 = int_to_ptr.hbm [resolvable:$true] %s61
      %s63 = sshll.u32 [#allocation10], 4
      %s64 = int_to_ptr.vmem [resolvable:$true] %s63
      %66 = dma.hbm_to_vmem [thread:$0]  %s62, 128, %s64, [#allocation11]
    $region25: #{tpu_custom_call.1} parent=1 // pred_fallthru
      _
    // Predicated region
    $region26: #{tpu_custom_call.1} parent=1 // pred_check
      _
    $region27: #{tpu_custom_call.1} parent=1 // pred_check_branch
      %68 = sbr.rel (0) target = $region29
    $region28: #{tpu_custom_call.1} parent=1 // pred_region
      %70 = vsyncadd [#allocation11], 0
      %s72 = sshll.u32 %s6, 4
      %s73 = int_to_ptr.hbm [resolvable:$true] %s72
      %s74 = sshll.u32 [#allocation12], 4
      %s75 = int_to_ptr.vmem [resolvable:$true] %s74
      %77 = dma.hbm_to_vmem [thread:$0]  %s73, 128, %s75, [#allocation11]
    $region29: #{tpu_custom_call.1} parent=1 // pred_fallthru
      _
    // Predicated region
    $region30: #{tpu_custom_call.1} parent=1 // pred_check
      _
    $region31: #{tpu_custom_call.1} parent=1 // pred_check_branch
      %79 = sbr.rel (0) target = $region33
    $region32: #{tpu_custom_call.1} parent=1 // pred_region
      _
    $region33: #{tpu_custom_call.1} parent=1 // pred_fallthru
      _
    // Predicated region
    $region34: #{tpu_custom_call.1} parent=1 // pred_check
      _
    $region35: #{tpu_custom_call.1} parent=1 // pred_check_branch
      %81 = sbr.rel (0) target = $region37
    $region36: #{tpu_custom_call.1} parent=1 // pred_region
      %83 = dma.done [#allocation5], 128
    $region37: #{tpu_custom_call.1} parent=1 // pred_fallthru
      _
    // Predicated region
    $region38: #{tpu_custom_call.1} parent=1 // pred_check
      _
    $region39: #{tpu_custom_call.1} parent=1 // pred_check_branch
      %85 = sbr.rel (0) target = $region41
    $region40: #{tpu_custom_call.1} parent=1 // pred_region
      %87 = dma.done [#allocation8], 16
    $region41: #{tpu_custom_call.1} parent=1 // pred_fallthru
      _
    // Predicated region
    $region42: #{tpu_custom_call.1} parent=1 // pred_check
      _
    $region43: #{tpu_custom_call.1} parent=1 // pred_check_branch
      %89 = sbr.rel (0) target = $region45
    $region44: #{tpu_custom_call.1} parent=1 // pred_region
      %91 = dma.done [#allocation8], 128
    $region45: #{tpu_custom_call.1} parent=1 // pred_fallthru
      _
    // Predicated region
    $region46: #{tpu_custom_call.1} parent=1 // pred_check
      _
    $region47: #{tpu_custom_call.1} parent=1 // pred_check_branch
      %93 = sbr.rel (0) target = $region49
    $region48: #{tpu_custom_call.1} parent=1 // pred_region
      %95 = dma.done [#allocation11], 128
    $region49: #{tpu_custom_call.1} parent=1 // pred_fallthru
      _
    // Predicated region
    $region50: #{tpu_custom_call.1} parent=1 // pred_check
      _
    $region51: #{tpu_custom_call.1} parent=1 // pred_check_branch
      %97 = sbr.rel (0) target = $region53
    $region52: #{tpu_custom_call.1} parent=1 // pred_region
      %99 = dma.done [#allocation11], 128
    $region53: #{tpu_custom_call.1} parent=1 // pred_fallthru
      _
    %s100 = sld [smem:[#allocation2]]
    %v101 = vstv %s100
    %v102 = vrcp.pop %v101
    %v103 = vmul.f32 %v101, %v102
    %v104 = vsub.f32 1.0, %v103
    %v105 = vmul.f32 %v102, %v104
    %v106 = vadd.f32 %v102, %v105
    %vm107 = vweird.f32 %v101
    %vm108 = vweird.f32 %v102
    %vm109 = vmor %vm107, %vm108
    %v110 = vsel %vm109, %v102, %v106
    %v111 = vand.u32 2147483647, %v101
    %vm112 = vcmp.eq.f32.partialorder %v111, 8.507059e+37
    %v113 = vand.u32 %v101, 2147483648
    %v114 = vor.u32 1.1754944e-38, %v113
    %v115 = vsel %vm112, %v114, %v110
    %s116 = vtos %v115
    %p117 = scmp.eq.s32.totalorder 0, 0
    // Predicated region
    $region54: #{tpu_custom_call.1} parent=1 // pred_check
      %p118 = pneg %p117
    $region55: #{tpu_custom_call.1} parent=1 // pred_check_branch
      %120 = sbr.rel (%p118) target = $region57
    $region56: #{tpu_custom_call.1} parent=1 // pred_region
      %v121 = vld [vmem:[#allocation4] sm:$0x1f]
      %v122 = vld [vmem:[#allocation7] sm:$0x1]
      %vm123 = vcmask 126976
      %v124 = vsel %vm123, %v121, -inf
      %v125 = vrot.slane %v124, 4
      %v126 = vmax.f32 %v124, %v125
      %v127 = vrot.slane %v126, 2
      %v128 = vmax.f32 %v126, %v127
      %v129 = vrot.slane %v128, 1
      %v130 = vmax.f32 %v128, %v129
      %v131 = vsub.f32 %v121, %v130
      %v132 = vmul.f32 %v131, 1.442695
      %v133 = vpow.pop %v132
      %v134 = vsel %vm123, %v133, 0.0
      %v135 = vrot.slane %v134, 4
      %v136 = vadd.f32 %v134, %v135
      %v137 = vrot.slane %v136, 2
      %v138 = vadd.f32 %v136, %v137
      %v139 = vrot.slane %v138, 1
      %v140 = vadd.f32 %v138, %v139
      %v141 = vlog2.pop %v140
      %v142 = vmul.f32 %v141, 0.6931472
      %v143 = vadd.f32 %v142, %v130
      %v144 = vlaneseq
      %v145 = vshrl.u32 %v144, 7
      %v146 = vperm.slane %v122, 0
      %vm147 = vcmp.eq.s32.totalorder %v145, %v146
      %v148 = vsel %vm147, 1, 0
      %v149 = vcvt.s32.f32 %v148
      %v150 = vsub.f32 %v143, %v121
      %v151 = vmul.f32 %v149, %v150
      %v152 = vsel %vm123, %v151, 0.0
      %v153 = vrot.slane %v152, 4
      %v154 = vadd.f32 %v152, %v153
      %v155 = vrot.slane %v154, 2
      %v156 = vadd.f32 %v154, %v155
      %v157 = vrot.slane %v156, 1
      %v158 = vadd.f32 %v156, %v157
      %vm159 = vcmp.eq.s32.totalorder %v122, 4
      %v160 = vsel %vm159, 0.1, 1.0
      %v161 = vmul.f32 %v160, %v158
      %vm162 = vcmask 122880
      %v163 = vsel %vm162, %v161, 0.0
      %164 = vadd.xlane.f32.xlu0 %v163
      %v165 = vpop.xlane.xlu0 %164
      %v166 = vrot.slane %v165, 4
      %v167 = vadd.f32 %v165, %v166
      %v168 = vrot.slane %v167, 2
      %v169 = vadd.f32 %v167, %v168
      %v170 = vrot.slane %v169, 1
      %v171 = vadd.f32 %v169, %v170
      %s172 = vtos %v171
      %v173 = vsel %vm162, %v160, 0.0
      %174 = vadd.xlane.f32.xlu0 %v173
      %v175 = vpop.xlane.xlu0 %174
      %v176 = vrot.slane %v175, 4
      %v177 = vadd.f32 %v175, %v176
      %v178 = vrot.slane %v177, 2
      %v179 = vadd.f32 %v177, %v178
      %v180 = vrot.slane %v179, 1
      %v181 = vadd.f32 %v179, %v180
      %s182 = vtos %v181
      %v183 = vstv %s182
      %v184 = vrcp.pop %v183
      %v185 = vmul.f32 %v183, %v184
      %v186 = vsub.f32 1.0, %v185
      %v187 = vmul.f32 %v184, %v186
      %v188 = vadd.f32 %v184, %v187
      %vm189 = vweird.f32 %v183
      %vm190 = vweird.f32 %v184
      %vm191 = vmor %vm189, %vm190
      %v192 = vsel %vm191, %v184, %v188
      %v193 = vand.u32 2147483647, %v183
      %vm194 = vcmp.eq.f32.partialorder %v193, 8.507059e+37
      %v195 = vand.u32 %v183, 2147483648
      %v196 = vor.u32 1.1754944e-38, %v195
      %v197 = vsel %vm194, %v196, %v192
      %s198 = vtos %v197
      %s199 = smul.f32 %s172, %s198
      %s200 = scalar_lea.smem [#allocation13], 0
      %201 = sst [smem:[%s200]] %s199
      %s202 = scalar_lea.smem [#allocation13], 1
      %203 = sst [smem:[%s202]] 0.0
      %s204 = scalar_lea.smem [#allocation13], 2
      %205 = sst [smem:[%s204]] 0.0
      %v206 = vld [vmem:[#allocation12] sm:$0x3f]
      %v207 = vld [vmem:[%s7] sm:$0x3f]
      %v208 = vand.u32 2147483647, %v206
      %v209 = vsub.f32 0.0, %v208
      %v210 = vmul.f32 %v209, 1.442695
      %v211 = vpow.pop %v210
      %v212 = vmax.f32 %v206, 0.0
      %v213 = vmul.f32 %v206, %v207
      %v214 = vsub.f32 %v212, %v213
      %v215 = vadd.f32 %v211, 1.0
      %v216 = vlog2.pop %v215
      %v217 = vmul.f32 %v216, 0.6931472
      %v218 = vadd.f32 %v214, %v217
      %vm219 = vcmp.ge.f32.partialorder %v206, 0.0
      %v220 = vsel %vm219, 1.0, %v211
      %v221 = vrcp.pop %v215
      %v222 = vmul.f32 %v215, %v221
      %v223 = vsub.f32 1.0, %v222
      %v224 = vmul.f32 %v221, %v223
      %v225 = vadd.f32 %v221, %v224
      %vm226 = vweird.f32 %v215
      %vm227 = vweird.f32 %v221
      %vm228 = vmor %vm226, %vm227
      %v229 = vsel %vm228, %v221, %v225
      %v230 = vand.u32 2147483647, %v215
      %vm231 = vcmp.eq.f32.partialorder %v230, 8.507059e+37
      %v232 = vand.u32 %v215, 2147483648
      %v233 = vor.u32 1.1754944e-38, %v232
      %v234 = vsel %vm231, %v233, %v229
      %v235 = vmul.f32 %v220, %v234
      %v236 = vmul.f32 %v235, %v207
      %v237 = vsub.f32 1.0, %v235
      %v238 = vsub.f32 1.0, %v207
      %v239 = vmul.f32 %v237, %v238
      %v240 = vadd.f32 %v236, %v239
      %v241 = vmul.f32 %v207, 0.25
      %v242 = vmul.f32 %v238, 0.75
      %v243 = vadd.f32 %v241, %v242
      %v244 = vmul.f32 %v243, %v218
      %v245 = vsub.f32 1.0, %v240
      %v246 = vmul.f32 %v245, %v245
      %v247 = vmul.f32 %v244, %v246
      %vm248 = vcmask 128000
      %v249 = vsel %vm248, %v247, 0.0
      %250 = vadd.xlane.f32.xlu0 %v249
      %v251 = vpop.xlane.xlu0 %250
      %v252 = vrot.slane %v251, 4
      %v253 = vadd.f32 %v251, %v252
      %v254 = vrot.slane %v253, 2
      %v255 = vadd.f32 %v253, %v254
      %v256 = vrot.slane %v255, 1
      %v257 = vadd.f32 %v255, %v256
      %s258 = vtos %v257
      %s259 = smul.f32 %s258, %s116
      %s260 = scalar_lea.smem [#allocation13], 3
      %261 = sst [smem:[%s260]] %s259
    $region57: #{tpu_custom_call.1} parent=1 // pred_fallthru
      _
    %v262 = vld [vmem:[#allocation9] sm:$0xff]
    %v263 = vld [vmem:[#allocation10] sm:$0xff]
    %v264 = vlaneseq
    %v265 = vshrl.u32 %v264, 7
    %s266 = smul.u32 0, 8
    %v267 = vstv %s266
    %v268 = vadd.s32 %v265, %v267
    %s269 = sld [smem:[#allocation3]]
    %v270 = vstv %s269
    %vm271 = vcmp.lt.s32.totalorder %v268, %v270
    %v272 = vsel %vm271, 1, 0
    %v273 = vcvt.s32.f32 %v272
    %v274 = vand.u32 2147483647, %v262
    %v275 = vsub.f32 0.0, %v274
    %v276 = vmul.f32 %v275, 1.442695
    %v277 = vpow.pop %v276
    %v278 = vmax.f32 %v262, 0.0
    %v279 = vmul.f32 %v262, %v263
    %v280 = vsub.f32 %v278, %v279
    %v281 = vadd.f32 %v277, 1.0
    %v282 = vlog2.pop %v281
    %v283 = vmul.f32 %v282, 0.6931472
    %v284 = vadd.f32 %v280, %v283
    %vm285 = vcmp.ge.f32.partialorder %v262, 0.0
    %v286 = vsel %vm285, 1.0, %v277
    %v287 = vrcp.pop %v281
    %v288 = vmul.f32 %v281, %v287
    %v289 = vsub.f32 1.0, %v288
    %v290 = vmul.f32 %v287, %v289
    %v291 = vadd.f32 %v287, %v290
    %vm292 = vweird.f32 %v281
    %vm293 = vweird.f32 %v287
    %vm294 = vmor %vm292, %vm293
    %v295 = vsel %vm294, %v287, %v291
    %v296 = vand.u32 2147483647, %v281
    %vm297 = vcmp.eq.f32.partialorder %v296, 8.507059e+37
    %v298 = vand.u32 %v281, 2147483648
    %v299 = vor.u32 1.1754944e-38, %v298
    %v300 = vsel %vm297, %v299, %v295
    %v301 = vmul.f32 %v286, %v300
    %vm302 = vcmask 130048
    %v303 = vsel %vm302, %v284, 0.0
    %304 = vadd.xlane.f32.xlu0 %v303
    %v305 = vpop.xlane.xlu0 %304
    %s306 = sld [smem:[#allocation13 + $0x1]]
    %v307 = vmul.f32 %v273, %v305
    %vm308 = vcmask 7168
    %v309 = vsel %vm308, %v307, 0.0
    %310 = vadd.xlane.f32.xlu0 %v309
    %v311 = vpop.xlane.xlu0 %310
    %v312 = vrot.slane %v311, 4
    %v313 = vadd.f32 %v311, %v312
    %v314 = vrot.slane %v313, 2
    %v315 = vadd.f32 %v313, %v314
    %v316 = vrot.slane %v315, 1
    %v317 = vadd.f32 %v315, %v316
    %s318 = vtos %v317
    %s319 = sadd.f32 %s306, %s318
    %s320 = scalar_lea.smem [#allocation13], 1
    %321 = sst [smem:[%s320]] %s319
    %v322 = vmul.f32 %v301, %v263
    %v323 = vsel %vm302, %v322, 0.0
    %324 = vadd.xlane.f32.xlu0 %v323
    %v325 = vpop.xlane.xlu0 %324
    %v326 = vmul.f32 %v325, 2.0
    %v327 = vadd.f32 %v301, %v263
    %v328 = vsel %vm302, %v327, 0.0
    %329 = vadd.xlane.f32.xlu0 %v328
    %v330 = vpop.xlane.xlu0 %329
    %v331 = vadd.f32 %v326, 1.0
    %v332 = vadd.f32 %v330, 1.0
    %v333 = vrcp.pop %v332
    %v334 = vmul.f32 %v332, %v333
    %v335 = vsub.f32 1.0, %v334
    %v336 = vmul.f32 %v333, %v335
    %v337 = vadd.f32 %v333, %v336
    %vm338 = vweird.f32 %v332
    %vm339 = vweird.f32 %v333
    %vm340 = vmor %vm338, %vm339
    %v341 = vsel %vm340, %v333, %v337
    %v342 = vand.u32 2147483647, %v332
    %vm343 = vcmp.eq.f32.partialorder %v342, 8.507059e+37
    %v344 = vand.u32 %v332, 2147483648
    %v345 = vor.u32 1.1754944e-38, %v344
    %v346 = vsel %vm343, %v345, %v341
    %v347 = vmul.f32 %v331, %v346
    %v348 = vsub.f32 1.0, %v347
    %s349 = sld [smem:[#allocation13 + $0x2]]
    %v350 = vmul.f32 %v273, %v348
    %v351 = vsel %vm308, %v350, 0.0
    %352 = vadd.xlane.f32.xlu0 %v351
    %v353 = vpop.xlane.xlu0 %352
    %v354 = vrot.slane %v353, 4
    %v355 = vadd.f32 %v353, %v354
    %v356 = vrot.slane %v355, 2
    %v357 = vadd.f32 %v355, %v356
    %v358 = vrot.slane %v357, 1
    %v359 = vadd.f32 %v357, %v358
    %s360 = vtos %v359
    %s361 = sadd.f32 %s349, %s360
    %s362 = scalar_lea.smem [#allocation13], 2
    %363 = sst [smem:[%s362]] %s361
    // Predicated region
    $region58: #{tpu_custom_call.1} parent=1 // pred_check
      %p364 = pneg %p117
    $region59: #{tpu_custom_call.1} parent=1 // pred_check_branch
      %366 = sbr.rel (%p364) target = $region61
    $region60: #{tpu_custom_call.1} parent=1 // pred_region
      %s367 = sld [smem:[#allocation13 + $0x1]]
      %s368 = smul.f32 %s116, 0.0625
      %s369 = smul.f32 %s367, %s368
      %370 = sst [smem:[%s320]] %s369
      %s371 = sld [smem:[#allocation13 + $0x2]]
      %s372 = smul.f32 %s371, %s116
      %373 = sst [smem:[%s362]] %s372
    $region61: #{tpu_custom_call.1} parent=1 // pred_fallthru
      _
    // Predicated region
    $region62: #{tpu_custom_call.1} parent=1 // pred_check
      _
    $region63: #{tpu_custom_call.1} parent=1 // pred_check_branch
      %375 = sbr.rel (0) target = $region65
    $region64: #{tpu_custom_call.1} parent=1 // pred_region
      %377 = vsyncadd [#allocation6], 0
      %s379 = sshll.u32 %s8, 4
      %s380 = int_to_ptr.hbm [resolvable:$true] %s379
      %382 = dma.smem_to_hbm [#allocation13], 16, %s380, [#allocation6]
    $region65: #{tpu_custom_call.1} parent=1 // pred_fallthru
      _
    // Predicated region
    $region66: #{tpu_custom_call.1} parent=1 // pred_check
      _
    $region67: #{tpu_custom_call.1} parent=1 // pred_check_branch
      %384 = sbr.rel (0) target = $region69
    $region68: #{tpu_custom_call.1} parent=1 // pred_region
      %386 = dma.done [#allocation6], 16
    $region69: #{tpu_custom_call.1} parent=1 // pred_fallthru
      _
    %387 = sfence
    %388 = vsyncpa [#allocation5], 1
    %389 = vsyncpa [#allocation8], 1
    %390 = vsyncpa [#allocation11], 1
    %391 = vsyncpa [#allocation6], 1

</llo_original>
